<compile_context>
chip_gen: v5e
topology: v5e:2x2
jax: 0.10.0
libtpu: 0.0.40
codegen_flags: <defaults>
</compile_context>

<pallas_src>
import functools

import jax
import jax.numpy as jnp
from jax.experimental import pallas as pl
from jax.experimental.pallas import tpu as pltpu


# ----------------------------------------------------------------------------
# Kernel
# ----------------------------------------------------------------------------
def _lp_fused_kernel(adj_ref, out0_ref, mask_ref, o_ref,
                     acc_ref, outbuf_ref, adj_vmem_ref=None, dma_sem=None,
                     *, n_pad, tm, tk, adj_resident):
    """Fused K-step label propagation.

    grid = (K, n_pad // tm, n_pad // tk)   (all sequential / "arbitrary")

    adj_ref:
      - resident mode : full (nK, n_pad, tk) HBM ref (memory_space=pl.ANY),
                        copied once into adj_vmem_ref.
      - streaming mode: (tm, tk) VMEM tile delivered by BlockSpec.
    out0_ref : (n_pad, Cp) VMEM-resident  (= where(mask, y_onehot, 0))
    mask_ref : (n_pad, 1)  VMEM-resident  (1.0 on train nodes)
    o_ref    : (tm, Cp) output tile for the current row tile.
    acc_ref  : (tm, Cp) f32 accumulator.
    outbuf_ref: (2*n_pad, Cp) f32 ping-pong buffer holding the iterate.
    """
    t = pl.program_id(0)      # propagation step
    i = pl.program_id(1)      # row tile
    k = pl.program_id(2)      # reduction (column) tile
    nk = pl.num_programs(2)

    # ---- one-time init at the very first grid step -------------------------
    @pl.when((t == 0) & (i == 0) & (k == 0))
    def _():
        if adj_resident:
            # Copy the folded adjacency HBM -> VMEM once; reused for all K steps.
            cp = pltpu.make_async_copy(adj_ref, adj_vmem_ref, dma_sem)
            cp.start()
            cp.wait()
        # Ping-pong buffer 0 starts as out0 = where(mask, y, 0).
        for r in range(n_pad // tm):
            off = r * tm
            outbuf_ref[pl.ds(off, tm), :] = out0_ref[pl.ds(off, tm), :]

    # ---- accumulate adj_eff @ out over the reduction axis ------------------
    @pl.when(k == 0)
    def _():
        acc_ref[...] = jnp.zeros_like(acc_ref)

    rbuf = t % 2                                   # buffer holding prev iterate
    rhs_off = pl.multiple_of(rbuf * n_pad + k * tk, tk)
    rhs = outbuf_ref[pl.ds(rhs_off, tk), :]        # (tk, Cp)

    if adj_resident:
        # Pre-tiled layout (k-tile, rows, cols-in-tile): only leading-dim /
        # sublane dynamic indexing, no dynamic lane slicing.
        a = adj_vmem_ref[k, pl.ds(pl.multiple_of(i * tm, tm), tm), :]
    else:
        a = adj_ref[...]                           # (tm, tk)

    acc_ref[...] += jnp.dot(a, rhs, preferred_element_type=jnp.float32)

    # ---- epilogue: re-inject train labels, clip, store next iterate --------
    @pl.when(k == nk - 1)
    def _():
        row = pl.multiple_of(i * tm, tm)
        y_rows = out0_ref[pl.ds(row, tm), :]       # equals y on train rows
        m_rows = mask_ref[pl.ds(row, tm), :]       # (tm, 1)
        res = jnp.clip(jnp.where(m_rows > 0.0, y_rows, acc_ref[...]), 0.0, 1.0)
        # Write the new iterate into the other ping-pong buffer (Jacobi).
        w_off = pl.multiple_of((1 - rbuf) * n_pad + i * tm, tm)
        outbuf_ref[pl.ds(w_off, tm), :] = res
        # Output tile: only the last iteration's values survive in HBM.
        o_ref[...] = res.astype(o_ref.dtype)


# ----------------------------------------------------------------------------
# Wrapper helpers
# ----------------------------------------------------------------------------
def _round_up(x, m):
    return ((x + m - 1) // m) * m


def _fit_tile(n_pad, pref):
    """Largest multiple of 128 that divides n_pad and is <= pref."""
    t = max(128, (min(pref, n_pad) // 128) * 128)
    while n_pad % t:
        t -= 128
    return t


def _vmem_capacity_bytes():
    # Per-TensorCore VMEM: 128 MiB on v5e/v6e, 64 MiB on v7x.
    try:
        return int(pltpu.get_tpu_info().vmem_capacity_bytes)
    except Exception:
        return 64 * 1024 * 1024  # conservative (v7x is the smallest)


def _vmem_bytes(n_pad, c_pad, tm, tk, adj_resident):
    b = 4
    est = 2 * n_pad * c_pad * b          # ping-pong iterate scratch
    est += tm * c_pad * b                # accumulator
    est += 2 * tm * c_pad * b            # pipelined output tile (2 buffers)
    est += 2 * n_pad * c_pad * b         # out0 (resident input, assume 2 bufs)
    est += 2 * n_pad * 128 * b           # mask (lane-padded), 2 bufs
    if adj_resident:
        est += n_pad * n_pad * b         # adjacency held in VMEM across all K
    else:
        est += 2 * tm * tk * b           # streamed adjacency tile, 2 bufs
    return est


def _lp_fused(adj_eff, out0, mask_f, *, K, tm, tk, adj_resident, vmem_limit):
    Np, Cp = out0.shape
    nI, nK = Np // tm, Np // tk
    grid = (K, nI, nK)                   # reduction axis last (convention)

    kernel = functools.partial(_lp_fused_kernel, n_pad=Np, tm=tm, tk=tk,
                               adj_resident=adj_resident)

    scratch = [
        pltpu.VMEM((tm, Cp), jnp.float32),        # accumulator
        pltpu.VMEM((2 * Np, Cp), jnp.float32),    # ping-pong iterate
    ]
    if adj_resident:
        # Pre-tile the adjacency as (k-tile, rows, cols-in-tile) so the kernel
        # never needs a dynamic slice along the lane dimension.
        adj_in = adj_eff.reshape(Np, nK, tk).transpose(1, 0, 2)
        adj_spec = pl.BlockSpec(memory_space=pl.ANY)      # raw HBM, manual DMA
        scratch.append(pltpu.VMEM((nK, Np, tk), jnp.float32))
        scratch.append(pltpu.SemaphoreType.DMA)
    else:
        adj_in = adj_eff
        adj_spec = pl.BlockSpec((tm, tk), lambda t, i, k: (i, k))

    return pl.pallas_call(
        kernel,
        out_shape=jax.ShapeDtypeStruct((Np, Cp), jnp.float32),
        grid_spec=pltpu.PrefetchScalarGridSpec(
            num_scalar_prefetch=0,
            grid=grid,
            in_specs=[
                adj_spec,
                # out0 / mask: full-array blocks with a constant index map ->
                # DMA'd into VMEM once and kept resident for the whole grid.
                pl.BlockSpec((Np, Cp), lambda t, i, k: (0, 0)),
                pl.BlockSpec((Np, 1), lambda t, i, k: (0, 0)),
            ],
            out_specs=pl.BlockSpec((tm, Cp), lambda t, i, k: (i, 0)),
            scratch_shapes=scratch,
        ),
        compiler_params=pltpu.CompilerParams(
            # The K axis carries a dependency and the iterate lives in per-core
            # VMEM scratch, so every axis must execute sequentially.
            dimension_semantics=("arbitrary", "arbitrary", "arbitrary"),
            vmem_limit_bytes=vmem_limit),
    )(adj_in, out0, mask_f)


# ----------------------------------------------------------------------------
# Public forward
# ----------------------------------------------------------------------------
def lp_forward(homo_adj, y, train_mask, K, alpha=0.9, temp=1, num_classes=None,
               tm=256, tk=512, adj_resident=None):
    """Full LP forward.  `temp` is unused in the reference forward pass."""
    del temp
    N = homo_adj.shape[0]
    assert homo_adj.shape == (N, N)

    # One-hot encode integer labels (float soft labels pass through).
    if y.ndim == 1 and jnp.issubdtype(y.dtype, jnp.integer):
        if num_classes is None:
            # NOTE: forces a host sync and under-counts if the max label is
            # absent; pass num_classes explicitly (especially under jit).
            num_classes = int(jnp.max(y)) + 1
        y_onehot = jax.nn.one_hot(y, num_classes, dtype=jnp.float32)
    else:
        y_onehot = y.astype(jnp.float32)
    C = y_onehot.shape[1]

    mask_f = train_mask.astype(jnp.float32).reshape(N, 1)
    out0 = jnp.where(mask_f > 0.0, y_onehot, 0.0)
    if K == 0:
        return out0

    # ---- pad to TPU-friendly shapes (lane-dense C, tileable N) -------------
    Np = _round_up(N, 128)
    Cp = _round_up(C, 128)
    tm = _fit_tile(Np, tm)
    tk = _fit_tile(Np, tk)

    adj_p = jnp.pad(homo_adj.astype(jnp.float32), ((0, Np - N), (0, Np - N)))
    # Fold the (1-alpha)*out term into the adjacency once (amortized over K).
    adj_eff = alpha * adj_p + (1.0 - alpha) * jnp.eye(Np, dtype=jnp.float32)
    out0_p = jnp.pad(out0, ((0, Np - N), (0, Cp - C)))
    mask_p = jnp.pad(mask_f, ((0, Np - N), (0, 0)))

    # ---- VMEM budget & adjacency-residency dispatch (per-generation) -------
    cap = _vmem_capacity_bytes()
    if adj_resident is None:
        adj_resident = _vmem_bytes(Np, Cp, tm, tk, True) <= int(0.7 * cap)
    est = _vmem_bytes(Np, Cp, tm, tk, adj_resident)
    vmem_limit = int(min(int(0.9 * cap), max(est * 5 // 4, 32 * 1024 * 1024)))

    out_p = _lp_fused(adj_eff, out0_p, mask_p, K=K, tm=tm, tk=tk,
                      adj_resident=adj_resident, vmem_limit=vmem_limit)
    return out_p[:N, :C]


# ----------------------------------------------------------------------------
# Pure-JAX reference (for correctness checking)
# ----------------------------------------------------------------------------
def lp_forward_ref(homo_adj, y_onehot, mask_f, K, alpha):
    out = jnp.where(mask_f > 0.0, y_onehot, 0.0)
    for _ in range(K):
        out = alpha * (homo_adj @ out) + (1.0 - alpha) * out
        out = jnp.where(mask_f > 0.0, y_onehot, out)
        out = jnp.clip(out, 0.0, 1.0)
    return out


# ----------------------------------------------------------------------------
# Demo / self-test
# ----------------------------------------------------------------------------
def _make_case(key, N, C):
    k_adj, k_y, k_mask = jax.random.split(key, 3)
    raw = jax.random.uniform(k_adj, (N, N), dtype=jnp.float32)
    raw = (raw > 0.8).astype(jnp.float32) + jnp.eye(N, dtype=jnp.float32)
    adj = raw / jnp.sum(raw, axis=1, keepdims=True)          # row-normalized
    y = jax.random.randint(k_y, (N,), 0, C, dtype=jnp.int32)
    train_mask = jax.random.uniform(k_mask, (N,)) < 0.3
    return adj, y, train_mask


if __name__ == "__main__":
    key = jax.random.PRNGKey(0)
    k1, k2 = jax.random.split(key)

    # ---- case 1: small graph (single-tile grid), both adj paths ------------
    N, C, K, ALPHA = 128, 8, 3, 0.9
    adj, y, train_mask = _make_case(k1, N, C)
    y_onehot = jax.nn.one_hot(y, C, dtype=jnp.float32)
    mask_f = train_mask.astype(jnp.float32).reshape(N, 1)
    ref = lp_forward_ref(adj, y_onehot, mask_f, K=K, alpha=ALPHA)

    out_res = jax.block_until_ready(
        lp_forward(adj, y, train_mask, K=K, alpha=ALPHA, num_classes=C))
    out_str = jax.block_until_ready(
        lp_forward(adj, y, train_mask, K=K, alpha=ALPHA, num_classes=C,
                   adj_resident=False))

    assert out_res.shape == (N, C) and out_res.dtype == jnp.float32
    assert jnp.allclose(out_res, ref, atol=1e-5, rtol=1e-5), "resident mismatch"
    assert jnp.allclose(out_str, ref, atol=1e-5, rtol=1e-5), "streaming mismatch"

    # ---- case 2: multi row-tile / multi k-tile grid, both adj paths --------
    N2, C2, K2 = 384, 10, 4
    adj2, y2, mask2 = _make_case(k2, N2, C2)
    y2_onehot = jax.nn.one_hot(y2, C2, dtype=jnp.float32)
    mask2_f = mask2.astype(jnp.float32).reshape(N2, 1)
    ref2 = lp_forward_ref(adj2, y2_onehot, mask2_f, K=K2, alpha=ALPHA)

    out2_res = jax.block_until_ready(
        lp_forward(adj2, y2, mask2, K=K2, alpha=ALPHA, num_classes=C2,
                   tm=128, tk=128))
    out2_str = jax.block_until_ready(
        lp_forward(adj2, y2, mask2, K=K2, alpha=ALPHA, num_classes=C2,
                   tm=128, tk=128, adj_resident=False))

    assert jnp.allclose(out2_res, ref2, atol=1e-5, rtol=1e-5), "case2 resident mismatch"
    assert jnp.allclose(out2_str, ref2, atol=1e-5, rtol=1e-5), "case2 streaming mismatch"

    print("KERNEL_OK")
</pallas_src>

<mosaic_0001>
module attributes {stable_mosaic.version = 11 : i64} {
  func.func @_lp_fused_kernel(%arg0: i32, %arg1: i32, %arg2: i32, %arg3: memref<1x128x128xf32, #tpu.memory_space<any>>, %arg4: memref<128x128xf32, #tpu.memory_space<vmem>>, %arg5: memref<128x1xf32, #tpu.memory_space<vmem>>, %arg6: memref<128x128xf32, #tpu.memory_space<vmem>>, %arg7: memref<128x128xf32, #tpu.memory_space<vmem>>, %arg8: memref<256x128xf32, #tpu.memory_space<vmem>>, %arg9: memref<1x128x128xf32, #tpu.memory_space<vmem>>, %arg10: memref<!tpu.dma_semaphore, #tpu.memory_space<semaphore_mem>>) attributes {dimension_semantics = [#tpu.dimension_semantics<arbitrary>, #tpu.dimension_semantics<arbitrary>, #tpu.dimension_semantics<arbitrary>], iteration_bounds = array<i64: 3, 1, 1>, scalar_prefetch = 0 : i64, scratch_operands = 4 : i64, tpu.core_type = #tpu.core_type<tc>, window_params = [{}, {pipeline_mode = #tpu.pipeline_mode<synchronous>, transform_indices = @transform_1, window_bounds = array<i64: 128, 128>}, {pipeline_mode = #tpu.pipeline_mode<synchronous>, transform_indices = @transform_2, window_bounds = array<i64: 128, 1>}, {transform_indices = @transform_3, window_bounds = array<i64: 128, 128>}]} {
    %c0_i32 = arith.constant 0 : i32
    %0 = arith.cmpi eq, %arg0, %c0_i32 : i32
    %c0_i32_0 = arith.constant 0 : i32
    %1 = arith.cmpi eq, %arg1, %c0_i32_0 : i32
    %2 = arith.andi %0, %1 : i1
    %c0_i32_1 = arith.constant 0 : i32
    %3 = arith.cmpi eq, %arg2, %c0_i32_1 : i32
    %4 = arith.andi %2, %3 : i1
    %5 = arith.extui %4 : i1 to i32
    %c0_i32_2 = arith.constant 0 : i32
    %6 = arith.cmpi ne, %5, %c0_i32_2 : i32
    scf.if %6 {
      tpu.enqueue_dma source(%arg3 : memref<1x128x128xf32, #tpu.memory_space<any>>) target(%arg9 : memref<1x128x128xf32, #tpu.memory_space<vmem>>) target_semaphore(%arg10 : memref<!tpu.dma_semaphore, #tpu.memory_space<semaphore_mem>>)
      tpu.wait_dma2 semaphore(%arg10 : memref<!tpu.dma_semaphore, #tpu.memory_space<semaphore_mem>>) src(%arg3 : memref<1x128x128xf32, #tpu.memory_space<any>>) dst(%arg9 : memref<1x128x128xf32, #tpu.memory_space<vmem>>)
      %c0_18 = arith.constant 0 : index
      %c0_19 = arith.constant 0 : index
      %39 = vector.load %arg4[%c0_18, %c0_19] : memref<128x128xf32, #tpu.memory_space<vmem>>, vector<128x128xf32>
      %c0_20 = arith.constant 0 : index
      %c0_21 = arith.constant 0 : index
      %40 = vector.load %arg8[%c0_20, %c0_21] : memref<256x128xf32, #tpu.memory_space<vmem>>, vector<128x128xf32>
      tpu.vector_store %arg8[%c0_20, %c0_21], %39 {strides = array<i32>} : memref<256x128xf32, #tpu.memory_space<vmem>>, vector<128x128xf32>,
    } else {
    }
    %c0_i32_3 = arith.constant 0 : i32
    %7 = arith.cmpi eq, %arg2, %c0_i32_3 : i32
    %8 = arith.extui %7 : i1 to i32
    %c0_i32_4 = arith.constant 0 : i32
    %9 = arith.cmpi ne, %8, %c0_i32_4 : i32
    scf.if %9 {
      %cst_18 = arith.constant 0.000000e+00 : f32
      %39 = vector.broadcast %cst_18 : f32 to vector<128x128xf32>
      %c0_19 = arith.constant 0 : index
      %c0_20 = arith.constant 0 : index
      %40 = vector.load %arg7[%c0_19, %c0_20] : memref<128x128xf32, #tpu.memory_space<vmem>>, vector<128x128xf32>
      tpu.vector_store %arg7[%c0_19, %c0_20], %39 {strides = array<i32>} : memref<128x128xf32, #tpu.memory_space<vmem>>, vector<128x128xf32>,
    } else {
    }
    %c2_i32 = arith.constant 2 : i32
    %c0_i32_5 = arith.constant 0 : i32
    %10 = arith.cmpi eq, %c2_i32, %c0_i32_5 : i32
    %c1_i32 = arith.constant 1 : i32
    %11 = arith.select %10, %c1_i32, %c2_i32 : i32
    %12 = arith.remsi %arg0, %11 : i32
    %c0_i32_6 = arith.constant 0 : i32
    %13 = arith.cmpi ne, %12, %c0_i32_6 : i32
    %c0_i32_7 = arith.constant 0 : i32
    %14 = arith.cmpi slt, %12, %c0_i32_7 : i32
    %c0_i32_8 = arith.constant 0 : i32
    %15 = arith.cmpi slt, %11, %c0_i32_8 : i32
    %16 = arith.xori %14, %15 : i1
    %17 = arith.andi %16, %13 : i1
    %18 = arith.addi %12, %11 : i32
    %19 = arith.select %17, %18, %12 : i32
    %c128_i32 = arith.constant 128 : i32
    %20 = arith.muli %19, %c128_i32 : i32
    %c128_i32_9 = arith.constant 128 : i32
    %21 = arith.muli %arg2, %c128_i32_9 : i32
    %22 = arith.addi %20, %21 : i32
    %23 = tpu.assume_multiple %22, 128 : i32
    %24 = arith.index_cast %23 : i32 to index
    %c0 = arith.constant 0 : index
    %25 = vector.load %arg8[%24, %c0] : memref<256x128xf32, #tpu.memory_space<vmem>>, vector<128x128xf32>
    %c128_i32_10 = arith.constant 128 : i32
    %26 = arith.muli %arg1, %c128_i32_10 : i32
    %27 = tpu.assume_multiple %26, 128 : i32
    %28 = arith.index_cast %arg2 : i32 to index
    %29 = arith.index_cast %27 : i32 to index
    %c0_11 = arith.constant 0 : index
    %30 = vector.load %arg9[%28, %29, %c0_11] : memref<1x128x128xf32, #tpu.memory_space<vmem>>, vector<1x128x128xf32>
    %31 = vector.shape_cast %30 : vector<1x128x128xf32> to vector<128x128xf32>
    %c0_12 = arith.constant 0 : index
    %c0_13 = arith.constant 0 : index
    %32 = vector.load %arg7[%c0_12, %c0_13] : memref<128x128xf32, #tpu.memory_space<vmem>>, vector<128x128xf32>
    %cst = arith.constant dense<0.000000e+00> : vector<128x128xf32>
    %33 = tpu.matmul %31, %25, %cst {dimension_numbers = #tpu.dot_dimension_numbers<[1], [0], [0], [1], [0, 0, 1, 1], [], []>} : vector<128x128xf32>, vector<128x128xf32>, vector<128x128xf32> -> vector<128x128xf32>
    %34 = arith.addf %32, %33 : vector<128x128xf32>
    %c0_14 = arith.constant 0 : index
    %c0_15 = arith.constant 0 : index
    %35 = vector.load %arg7[%c0_14, %c0_15] : memref<128x128xf32, #tpu.memory_space<vmem>>, vector<128x128xf32>
    tpu.vector_store %arg7[%c0_14, %c0_15], %34 {strides = array<i32>} : memref<128x128xf32, #tpu.memory_space<vmem>>, vector<128x128xf32>,
    %c0_i32_16 = arith.constant 0 : i32
    %36 = arith.cmpi eq, %arg2, %c0_i32_16 : i32
    %37 = arith.extui %36 : i1 to i32
    %c0_i32_17 = arith.constant 0 : i32
    %38 = arith.cmpi ne, %37, %c0_i32_17 : i32
    scf.if %38 {
      %c128_i32_18 = arith.constant 128 : i32
      %39 = arith.muli %arg1, %c128_i32_18 : i32
      %40 = tpu.assume_multiple %39, 128 : i32
      %41 = arith.index_cast %40 : i32 to index
      %c0_19 = arith.constant 0 : index
      %42 = vector.load %arg4[%41, %c0_19] : memref<128x128xf32, #tpu.memory_space<vmem>>, vector<128x128xf32>
      %43 = arith.index_cast %40 : i32 to index
      %c0_20 = arith.constant 0 : index
      %44 = vector.load %arg5[%43, %c0_20] : memref<128x1xf32, #tpu.memory_space<vmem>>, vector<128x1xf32>
      %cst_21 = arith.constant 0.000000e+00 : f32
      %45 = vector.broadcast %cst_21 : f32 to vector<128x1xf32>
      %46 = arith.cmpf ogt, %44, %45 : vector<128x1xf32>
      %c0_22 = arith.constant 0 : index
      %c0_23 = arith.constant 0 : index
      %47 = vector.load %arg7[%c0_22, %c0_23] : memref<128x128xf32, #tpu.memory_space<vmem>>, vector<128x128xf32>
      %48 = vector.shape_cast %46 : vector<128x1xi1> to vector<128x1xi1>
      %49 = vector.broadcast %48 : vector<128x1xi1> to vector<128x128xi1>
      %50 = arith.select %49, %42, %47 : vector<128x128xi1>, vector<128x128xf32>
      %cst_24 = arith.constant 0.000000e+00 : f32
      %cst_25 = arith.constant 1.000000e+00 : f32
      %51 = vector.broadcast %cst_24 : f32 to vector<128x128xf32>
      %52 = arith.maximumf %51, %50 : vector<128x128xf32>
      %53 = vector.broadcast %cst_25 : f32 to vector<128x128xf32>
      %54 = arith.minimumf %53, %52 : vector<128x128xf32>
      %c1_i32_26 = arith.constant 1 : i32
      %55 = arith.subi %c1_i32_26, %19 : i32
      %c128_i32_27 = arith.constant 128 : i32
      %56 = arith.muli %55, %c128_i32_27 : i32
      %c128_i32_28 = arith.constant 128 : i32
      %57 = arith.muli %arg1, %c128_i32_28 : i32
      %58 = arith.addi %56, %57 : i32
      %59 = tpu.assume_multiple %58, 128 : i32
      %60 = arith.index_cast %59 : i32 to index
      %c0_29 = arith.constant 0 : index
      %61 = vector.load %arg8[%60, %c0_29] : memref<256x128xf32, #tpu.memory_space<vmem>>, vector<128x128xf32>
      tpu.vector_store %arg8[%60, %c0_29], %54 {strides = array<i32>} : memref<256x128xf32, #tpu.memory_space<vmem>>, vector<128x128xf32>,
      %c0_30 = arith.constant 0 : index
      %c0_31 = arith.constant 0 : index
      %62 = vector.load %arg6[%c0_30, %c0_31] : memref<128x128xf32, #tpu.memory_space<vmem>>, vector<128x128xf32>
      tpu.vector_store %arg6[%c0_30, %c0_31], %54 {strides = array<i32>} : memref<128x128xf32, #tpu.memory_space<vmem>>, vector<128x128xf32>,
    } else {
    }
    return
  }
  func.func @transform_1(%arg0: i32, %arg1: i32, %arg2: i32) -> (i32, i32) {
    %c0_i32 = arith.constant 0 : i32
    %c0_i32_0 = arith.constant 0 : i32
    %c0_i32_1 = arith.constant 0 : i32
    return %c0_i32, %c0_i32_0 : i32, i32
  }
  func.func @transform_2(%arg0: i32, %arg1: i32, %arg2: i32) -> (i32, i32) {
    %c0_i32 = arith.constant 0 : i32
    %c0_i32_0 = arith.constant 0 : i32
    %c0_i32_1 = arith.constant 0 : i32
    return %c0_i32, %c0_i32_0 : i32, i32
  }
  func.func @transform_3(%arg0: i32, %arg1: i32, %arg2: i32) -> (i32, i32) {
    %c0_i32 = arith.constant 0 : i32
    %c0_i32_0 = arith.constant 0 : i32
    return %arg1, %c0_i32 : i32, i32
  }
}

</mosaic_0001>

<llo_original>
// kernel: tpu_custom_call.1
$region0: #{tpu_custom_call.1}
  #allocation0 [shape = 'u32[]', space=smem, size = 0x4, offset = 0x4, fixed_abs, tag = 'smem constant byte address 0x4 - core index']
  #allocation1 [shape = 'u32[72,128]{1,0:T(1,128)}', space=vmem, size = 0x9000, scoped, tag = 'internal scratch']
  #allocation2 [shape = 'f32[128,128]{1,0:T(8,128)}', space=vmem, size = 0x10000, scoped, tag = 'scratch operand']
  #allocation3 [shape = 'f32[256,128]{1,0:T(8,128)}', space=vmem, size = 0x20000, scoped, tag = 'scratch operand']
  #allocation4 [shape = 'f32[1,128,128]{2,1,0:T(8,128)}', space=vmem, size = 0x10000, scoped, tag = 'scratch operand']
  #allocation5 [shape = 's32[1]{0}', space=sflag, size = 0x4, scoped, tag = 'scratch operand']
  #allocation10 [shape = 's32[]', space=sflag, size = 0x4, offset = 0, fixed_abs, tag = 'sflag constant byte address 0x0 - dummy sync flag']
  %s0 = inlined_call_operand.vmem [shape: f32[1,128,128], index: 0, kind: input, shape index: {}]
  %s1 = inlined_call_operand.hbm [shape: f32[128,128], index: 1, kind: input, shape index: {}]
  %s2 = inlined_call_operand.vmem [shape: f32[128,1], index: 2, kind: input, shape index: {}]
  %s3 = inlined_call_operand.hbm [shape: f32[128,128], index: 3, kind: output, shape index: {}]
  %s4 = sld [smem:[#allocation0]]
  $region76: #{tpu_custom_call.1} parent=0
    _
  %s6 = ssub.s32 1, %s4
  %s7 = scalar_select 0, %s6, %s4
  $region1: #{tpu_custom_call.1} parent=0
    #allocation6 [shape = 'u8[65536]{0}', space=vmem, size = 0x10000, scoped, tag = 'input window, operand 1, single buffered']
    #allocation7 [shape = 's32[2]{0}', space=sflag, size = 0x8, scoped, tag = 'scoped memory for tpu_custom_call.1']
    #allocation8 [shape = 's32[2]{0}', space=sflag, size = 0x8, scoped, tag = 'scoped memory for tpu_custom_call.1']
    #allocation9 [shape = 'u8[65536]{0}', space=vmem, size = 0x10000, scoped, tag = 'output window, operand 0, single buffered']
    %8 = vsyncpa [#allocation7], 0
    %9 = vsyncpa [#allocation8], 0
    loop: start=0, step=1, limit=5
    $region2: #{tpu_custom_call.1} parent=1 // loop_pre_header
      _
    $region3: #{tpu_custom_call.1} parent=1 // loop_header
      %s11 = sphi 0, %s15
      %p12 = scmp.ge.s32.totalorder %s11, 5
      %s18 = sphi 0, %s37
      %s19 = sphi 0, %s33
      %s20 = sphi 0, %s29
      %s21 = sphi 0, %s18
      %s22 = sphi 0, %s19
      %s23 = sphi 0, %s20
      %s24 = sphi 0, %s21
      %s25 = sphi 0, %s22
      %s26 = sphi 0, %s23
      %s38 = sphi 0, %s38
      %s40 = sphi 0, %s38
      %s41 = sphi 0, %s40
      %s55 = sphi 0, %s41
      %s59 = sphi 0, %s59
      %s61 = sphi 0, %s59
      %s62 = sphi 0, %s61
      %s76 = sphi 0, %s62
      %s82 = sphi 0, %s84
      %s85 = sphi 0, %s82
      %s86 = sphi 0, %s85
      %s102 = sphi 0, %s86
    $region4: #{tpu_custom_call.1} parent=1 // loop_header_branch
      %14 = sbr.rel (%p12) target = $region8
    $region5: #{tpu_custom_call.1} parent=1 // loop_body
      %s16 = ssub.s32 %s11, 1
      %s17 = ssub.s32 %s11, 2
      %s27 = sadd.s32 1, %s20
      %p28 = scmp.ge.s32.totalorder %s27, 1
      %s29 = scalar_select %p28, 0, %s27
      %s30 = sadd.s32 1, %s19
      %s31 = scalar_select %p28, %s30, %s19
      %p32 = scmp.ge.s32.totalorder %s31, 1
      %s33 = scalar_select %p32, 0, %s31
      %s34 = sadd.s32 1, %s18
      %s35 = scalar_select %p32, %s34, %s18
      %p36 = scmp.ge.s32.totalorder %s35, 3
      %s37 = scalar_select %p36, 0, %s35
      %s39 = sadd.s32 %s38, 1
      %p42 = scmp.eq.s32.totalorder %s11, 2
      %p43 = scmp.ne.s32.totalorder %s38, %s40
      %p44 = scmp.eq.s32.totalorder %s11, 0
      %p45 = por %p43, %p44
      %p46 = scmp.ne.s32.totalorder %s38, %s40
      %p47 = scmp.eq.s32.totalorder %s16, 2
      %p48 = por %p46, %p47
      %p49 = scmp.ne.s32.totalorder %s40, %s41
      %p50 = scmp.eq.s32.totalorder %s16, 0
      %p51 = por %p49, %p50
      %p52 = scmp.ne.s32.totalorder %s40, %s41
      %p53 = scmp.eq.s32.totalorder %s17, 2
      %p54 = por %p52, %p53
      %p56 = scmp.ne.s32.totalorder %s41, %s55
      %p57 = scmp.eq.s32.totalorder %s17, 0
      %p58 = por %p56, %p57
      %s60 = sadd.s32 %s59, 1
      %p63 = scmp.eq.s32.totalorder %s11, 2
      %p64 = scmp.ne.s32.totalorder %s59, %s61
      %p65 = scmp.eq.s32.totalorder %s11, 0
      %p66 = por %p64, %p65
      %p67 = scmp.ne.s32.totalorder %s59, %s61
      %p68 = scmp.eq.s32.totalorder %s16, 2
      %p69 = por %p67, %p68
      %p70 = scmp.ne.s32.totalorder %s61, %s62
      %p71 = scmp.eq.s32.totalorder %s16, 0
      %p72 = por %p70, %p71
      %p73 = scmp.ne.s32.totalorder %s61, %s62
      %p74 = scmp.eq.s32.totalorder %s17, 2
      %p75 = por %p73, %p74
      %p77 = scmp.ne.s32.totalorder %s62, %s76
      %p78 = scmp.eq.s32.totalorder %s17, 0
      %p79 = por %p77, %p78
      %s80 = ssub.s32 %s19, %s33
      %p81 = scmp.eq.s32.totalorder %s80, 0
      %s83 = sadd.s32 %s82, 1
      %s84 = scalar_select %p81, %s82, %s83
      %p87 = pneg %p81
      %p88 = scmp.eq.s32.totalorder %s11, 2
      %p89 = por %p87, %p88
      %p90 = scmp.ne.s32.totalorder %s82, %s85
      %p91 = scmp.eq.s32.totalorder %s11, 0
      %p92 = por %p90, %p91
      %p93 = scmp.ne.s32.totalorder %s82, %s85
      %p94 = scmp.eq.s32.totalorder %s16, 2
      %p95 = por %p93, %p94
      %p96 = scmp.ne.s32.totalorder %s85, %s86
      %p97 = scmp.eq.s32.totalorder %s16, 0
      %p98 = por %p96, %p97
      %p99 = scmp.ne.s32.totalorder %s85, %s86
      %p100 = scmp.eq.s32.totalorder %s17, 2
      %p101 = por %p99, %p100
      %p103 = scmp.ne.s32.totalorder %s86, %s102
      %p104 = scmp.eq.s32.totalorder %s17, 0
      %p105 = por %p103, %p104
      %p106 = scmp.le.s32.totalorder 1, %s11
      %p107 = scmp.lt.s32.totalorder %s11, 4
      %p108 = pnand %p106, %p107
      %p109 = pneg %p108
      // Predicated region
      $region9: #{tpu_custom_call.1} parent=5 // pred_check
        _
      $region10: #{tpu_custom_call.1} parent=5 // pred_check_branch
        %111 = sbr.rel (%p108) target = $region12
      $region11: #{tpu_custom_call.1} parent=5 // pred_region
        %s112 = ssub.s32 %s11, 1
        // Predicated region
        $region13: #{tpu_custom_call.1} parent=11 // pred_check
          %p113 = pneg %p51
        $region14: #{tpu_custom_call.1} parent=11 // pred_check_branch
          %115 = sbr.rel (%p113) target = $region16
        $region15: #{tpu_custom_call.1} parent=11 // pred_region
          %117 = vsyncadd [#allocation7], 0
          %s118 = sshll.u32 %s1, 4
          %s119 = int_to_ptr.hbm [resolvable:$true] %s118
          %s120 = sshll.u32 [#allocation6], 4
          %s121 = int_to_ptr.vmem [resolvable:$true] %s120
          %126 = dma.hbm_to_vmem [thread:$0]  %s119, 2048, %s121, [#allocation7], 128, 128, 8
        $region16: #{tpu_custom_call.1} parent=11 // pred_fallthru
          _
        // Predicated region
        $region17: #{tpu_custom_call.1} parent=11 // pred_check
          %p127 = pneg %p72
        $region18: #{tpu_custom_call.1} parent=11 // pred_check_branch
          %129 = sbr.rel (%p127) target = $region20
        $region19: #{tpu_custom_call.1} parent=11 // pred_region
          _
        $region20: #{tpu_custom_call.1} parent=11 // pred_fallthru
          _
      $region12: #{tpu_custom_call.1} parent=5 // pred_fallthru
        _
      %p130 = scmp.lt.s32.totalorder %s11, 3
      // Predicated region
      $region21: #{tpu_custom_call.1} parent=5 // pred_check
        %p131 = pneg %p130
      $region22: #{tpu_custom_call.1} parent=5 // pred_check_branch
        %133 = sbr.rel (%p131) target = $region24
      $region23: #{tpu_custom_call.1} parent=5 // pred_region
        _
      $region24: #{tpu_custom_call.1} parent=5 // pred_fallthru
        _
      %p134 = scmp.le.s32.totalorder 1, %s11
      %p135 = scmp.lt.s32.totalorder %s11, 4
      %p136 = pnand %p134, %p135
      %p137 = pneg %p136
      // Predicated region
      $region25: #{tpu_custom_call.1} parent=5 // pred_check
        _
      $region26: #{tpu_custom_call.1} parent=5 // pred_check_branch
        %139 = sbr.rel (%p136) target = $region28
      $region27: #{tpu_custom_call.1} parent=5 // pred_region
        %s140 = ssub.s32 %s11, 1
        // Predicated region
        $region29: #{tpu_custom_call.1} parent=27 // pred_check
          %p141 = pneg %p51
        $region30: #{tpu_custom_call.1} parent=27 // pred_check_branch
          %143 = sbr.rel (%p141) target = $region32
        $region31: #{tpu_custom_call.1} parent=27 // pred_region
          %145 = dma.done [#allocation7], 2048
        $region32: #{tpu_custom_call.1} parent=27 // pred_fallthru
          _
        %p146 = pneg %p51
        %p147 = pneg %p48
        %p148 = pneg %p72
        %p149 = pneg %p69
        %p150 = pneg %p98
        %p151 = pneg %p95
        %s152 = smul.u32 16, %s22
        %p153 = scmp.eq.s32.totalorder %s21, 0
        %p154 = scmp.eq.s32.totalorder %s22, 0
        %p155 = pnand %p153, %p154
        %p156 = pneg %p155
        %p157 = scmp.eq.s32.totalorder %s23, 0
        %p158 = pnand %p156, %p157
        %p159 = pneg %p158
        // Predicated region
        $region33: #{tpu_custom_call.1} parent=27 // pred_check
          _
        $region34: #{tpu_custom_call.1} parent=27 // pred_check_branch
          %161 = sbr.rel (%p158) target = $region36
        $region35: #{tpu_custom_call.1} parent=27 // pred_region
          // Predicated region
          $region37: #{tpu_custom_call.1} parent=35 // pred_check
            _
          $region38: #{tpu_custom_call.1} parent=35 // pred_check_branch
            %163 = sbr.rel (0) target = $region40
          $region39: #{tpu_custom_call.1} parent=35 // pred_region
            loop: start=0, step=1, limit=1
            $region41: #{tpu_custom_call.1} parent=39 // loop_pre_header
              _
            $region42: #{tpu_custom_call.1} parent=39 // loop_header
              %s165 = sphi 0, %s169
              %p166 = scmp.ge.s32.totalorder %s165, 1
              %s170 = sphi %s0, %s0
              %s171 = sphi [#allocation4], [#allocation4]
            $region43: #{tpu_custom_call.1} parent=39 // loop_header_branch
              %168 = sbr.rel (%p166) target = $region47
            $region44: #{tpu_custom_call.1} parent=39 // loop_body
              %v172 = vld [vmem:[%s170] sm:$0xff]
              %173 = vst [vmem:[%s171] sm:$0xff] %v172
              %v174 = vld [vmem:[%s170 + $0x8] sm:$0xff]
              %175 = vst [vmem:[%s171 + $0x8] sm:$0xff] %v174
              %v176 = vld [vmem:[%s170 + $0x10] sm:$0xff]
              %177 = vst [vmem:[%s171 + $0x10] sm:$0xff] %v176
              %v178 = vld [vmem:[%s170 + $0x18] sm:$0xff]
              %179 = vst [vmem:[%s171 + $0x18] sm:$0xff] %v178
              %v180 = vld [vmem:[%s170 + $0x20] sm:$0xff]
              %181 = vst [vmem:[%s171 + $0x20] sm:$0xff] %v180
              %v182 = vld [vmem:[%s170 + $0x28] sm:$0xff]
              %183 = vst [vmem:[%s171 + $0x28] sm:$0xff] %v182
              %v184 = vld [vmem:[%s170 + $0x30] sm:$0xff]
              %185 = vst [vmem:[%s171 + $0x30] sm:$0xff] %v184
              %v186 = vld [vmem:[%s170 + $0x38] sm:$0xff]
              %187 = vst [vmem:[%s171 + $0x38] sm:$0xff] %v186
              %v188 = vld [vmem:[%s170 + $0x40] sm:$0xff]
              %189 = vst [vmem:[%s171 + $0x40] sm:$0xff] %v188
              %v190 = vld [vmem:[%s170 + $0x48] sm:$0xff]
              %191 = vst [vmem:[%s171 + $0x48] sm:$0xff] %v190
              %v192 = vld [vmem:[%s170 + $0x50] sm:$0xff]
              %193 = vst [vmem:[%s171 + $0x50] sm:$0xff] %v192
              %v194 = vld [vmem:[%s170 + $0x58] sm:$0xff]
              %195 = vst [vmem:[%s171 + $0x58] sm:$0xff] %v194
              %v196 = vld [vmem:[%s170 + $0x60] sm:$0xff]
              %197 = vst [vmem:[%s171 + $0x60] sm:$0xff] %v196
              %v198 = vld [vmem:[%s170 + $0x68] sm:$0xff]
              %199 = vst [vmem:[%s171 + $0x68] sm:$0xff] %v198
              %v200 = vld [vmem:[%s170 + $0x70] sm:$0xff]
              %201 = vst [vmem:[%s171 + $0x70] sm:$0xff] %v200
              %v202 = vld [vmem:[%s170 + $0x78] sm:$0xff]
              %203 = vst [vmem:[%s171 + $0x78] sm:$0xff] %v202
            $region45: #{tpu_custom_call.1} parent=39 // loop_footer
              %s169 = sadd.s32 1, %s165
            $region46: #{tpu_custom_call.1} parent=39 // loop_footer_branch
              %164 = sbr.rel target = $region42
            $region47: #{tpu_custom_call.1} parent=39 // loop_exit
              _
          $region40: #{tpu_custom_call.1} parent=35 // pred_fallthru
            _
          // Predicated region
          $region48: #{tpu_custom_call.1} parent=35 // pred_check
            _
          $region49: #{tpu_custom_call.1} parent=35 // pred_check_branch
            %205 = sbr.rel target = $region51
          $region50: #{tpu_custom_call.1} parent=35 // pred_region
            _
          $region51: #{tpu_custom_call.1} parent=35 // pred_fallthru
            _
          // Predicated region
          $region52: #{tpu_custom_call.1} parent=35 // pred_check
            _
          $region53: #{tpu_custom_call.1} parent=35 // pred_check_branch
            %208 = sbr.rel (0) target = $region55
          $region54: #{tpu_custom_call.1} parent=35 // pred_region
            %209 = vsyncadd [#allocation5], 2048
          $region55: #{tpu_custom_call.1} parent=35 // pred_fallthru
            _
          %s210 = smul.u32 1, 128
          %s211 = smul.u32 %s210, 1
          %s212 = sshll.u32 %s211, 4
          %213 = dma.done [#allocation5], %s212
          %v214 = vld [vmem:[#allocation6] sm:$0xff]
          %v215 = vld [vmem:[#allocation6 + $0x8] sm:$0xff]
          %v216 = vld [vmem:[#allocation6 + $0x10] sm:$0xff]
          %v217 = vld [vmem:[#allocation6 + $0x18] sm:$0xff]
          %v218 = vld [vmem:[#allocation6 + $0x20] sm:$0xff]
          %v219 = vld [vmem:[#allocation6 + $0x28] sm:$0xff]
          %v220 = vld [vmem:[#allocation6 + $0x30] sm:$0xff]
          %v221 = vld [vmem:[#allocation6 + $0x38] sm:$0xff]
          %v222 = vld [vmem:[#allocation6 + $0x40] sm:$0xff]
          %v223 = vld [vmem:[#allocation6 + $0x48] sm:$0xff]
          %v224 = vld [vmem:[#allocation6 + $0x50] sm:$0xff]
          %v225 = vld [vmem:[#allocation6 + $0x58] sm:$0xff]
          %v226 = vld [vmem:[#allocation6 + $0x60] sm:$0xff]
          %v227 = vld [vmem:[#allocation6 + $0x68] sm:$0xff]
          %v228 = vld [vmem:[#allocation6 + $0x70] sm:$0xff]
          %v229 = vld [vmem:[#allocation6 + $0x78] sm:$0xff]
          %230 = vst [vmem:[#allocation3] sm:$0xff] %v214
          %231 = vst [vmem:[#allocation3 + $0x8] sm:$0xff] %v215
          %232 = vst [vmem:[#allocation3 + $0x10] sm:$0xff] %v216
          %233 = vst [vmem:[#allocation3 + $0x18] sm:$0xff] %v217
          %234 = vst [vmem:[#allocation3 + $0x20] sm:$0xff] %v218
          %235 = vst [vmem:[#allocation3 + $0x28] sm:$0xff] %v219
          %236 = vst [vmem:[#allocation3 + $0x30] sm:$0xff] %v220
          %237 = vst [vmem:[#allocation3 + $0x38] sm:$0xff] %v221
          %238 = vst [vmem:[#allocation3 + $0x40] sm:$0xff] %v222
          %239 = vst [vmem:[#allocation3 + $0x48] sm:$0xff] %v223
          %240 = vst [vmem:[#allocation3 + $0x50] sm:$0xff] %v224
          %241 = vst [vmem:[#allocation3 + $0x58] sm:$0xff] %v225
          %242 = vst [vmem:[#allocation3 + $0x60] sm:$0xff] %v226
          %243 = vst [vmem:[#allocation3 + $0x68] sm:$0xff] %v227
          %244 = vst [vmem:[#allocation3 + $0x70] sm:$0xff] %v228
          %245 = vst [vmem:[#allocation3 + $0x78] sm:$0xff] %v229
        $region36: #{tpu_custom_call.1} parent=27 // pred_fallthru
          _
        // Predicated region
        $region56: #{tpu_custom_call.1} parent=27 // pred_check
          %p246 = pneg %p157
        $region57: #{tpu_custom_call.1} parent=27 // pred_check_branch
          %248 = sbr.rel (%p246) target = $region59
        $region58: #{tpu_custom_call.1} parent=27 // pred_region
          %249 = vst [vmem:[#allocation2] sm:$0xff] 0.0
          %250 = vst [vmem:[#allocation2 + $0x8] sm:$0xff] 0.0
          %251 = vst [vmem:[#allocation2 + $0x10] sm:$0xff] 0.0
          %252 = vst [vmem:[#allocation2 + $0x18] sm:$0xff] 0.0
          %253 = vst [vmem:[#allocation2 + $0x20] sm:$0xff] 0.0
          %254 = vst [vmem:[#allocation2 + $0x28] sm:$0xff] 0.0
          %255 = vst [vmem:[#allocation2 + $0x30] sm:$0xff] 0.0
          %256 = vst [vmem:[#allocation2 + $0x38] sm:$0xff] 0.0
          %257 = vst [vmem:[#allocation2 + $0x40] sm:$0xff] 0.0
          %258 = vst [vmem:[#allocation2 + $0x48] sm:$0xff] 0.0
          %259 = vst [vmem:[#allocation2 + $0x50] sm:$0xff] 0.0
          %260 = vst [vmem:[#allocation2 + $0x58] sm:$0xff] 0.0
          %261 = vst [vmem:[#allocation2 + $0x60] sm:$0xff] 0.0
          %262 = vst [vmem:[#allocation2 + $0x68] sm:$0xff] 0.0
          %263 = vst [vmem:[#allocation2 + $0x70] sm:$0xff] 0.0
          %264 = vst [vmem:[#allocation2 + $0x78] sm:$0xff] 0.0
        $region59: #{tpu_custom_call.1} parent=27 // pred_fallthru
          _
        %p265 = scmp.lt.s32.totalorder %s21, 0
        %s266 = ssub.s32 0, %s21
        %s267 = scalar_select %p265, %s266, %s21
        %s268 = sand.u32 %s267, 1
        %s269 = ssub.s32 0, %s268
        %s270 = scalar_select %p265, %s269, %s268
        %p271 = scmp.ne.s32.totalorder %s270, 0
        %p272 = scmp.lt.s32.totalorder %s270, 0
        %p273 = pnand %p272, %p271
        %p274 = pneg %p273
        %s275 = sadd.s32 %s270, 2
        %s276 = scalar_select %p274, %s275, %s270
        %s277 = smul.u32 %s276, 128
        %s278 = smul.u32 %s23, 128
        %s279 = sadd.s32 %s277, %s278
        %s280 = scalar_lea.vmem [#allocation3], %s279
        %v281 = vld [vmem:[%s280] sm:$0xff]
        %v282 = vld [vmem:[%s280 + $0x8] sm:$0xff]
        %v283 = vld [vmem:[%s280 + $0x10] sm:$0xff]
        %v284 = vld [vmem:[%s280 + $0x18] sm:$0xff]
        %v285 = vld [vmem:[%s280 + $0x20] sm:$0xff]
        %v286 = vld [vmem:[%s280 + $0x28] sm:$0xff]
        %v287 = vld [vmem:[%s280 + $0x30] sm:$0xff]
        %v288 = vld [vmem:[%s280 + $0x38] sm:$0xff]
        %v289 = vld [vmem:[%s280 + $0x40] sm:$0xff]
        %v290 = vld [vmem:[%s280 + $0x48] sm:$0xff]
        %v291 = vld [vmem:[%s280 + $0x50] sm:$0xff]
        %v292 = vld [vmem:[%s280 + $0x58] sm:$0xff]
        %v293 = vld [vmem:[%s280 + $0x60] sm:$0xff]
        %v294 = vld [vmem:[%s280 + $0x68] sm:$0xff]
        %v295 = vld [vmem:[%s280 + $0x70] sm:$0xff]
        %v296 = vld [vmem:[%s280 + $0x78] sm:$0xff]
        %s297 = smul.u32 %s22, 128
        %s298 = sadd.s32 %s297, %s278
        %s299 = scalar_lea.vmem [#allocation4], %s298
        %v300 = vld [vmem:[%s299] sm:$0xff]
        %v301 = vld [vmem:[%s299 + $0x8] sm:$0xff]
        %v302 = vld [vmem:[%s299 + $0x10] sm:$0xff]
        %v303 = vld [vmem:[%s299 + $0x18] sm:$0xff]
        %v304 = vld [vmem:[%s299 + $0x20] sm:$0xff]
        %v305 = vld [vmem:[%s299 + $0x28] sm:$0xff]
        %v306 = vld [vmem:[%s299 + $0x30] sm:$0xff]
        %v307 = vld [vmem:[%s299 + $0x38] sm:$0xff]
        %v308 = vld [vmem:[%s299 + $0x40] sm:$0xff]
        %v309 = vld [vmem:[%s299 + $0x48] sm:$0xff]
        %v310 = vld [vmem:[%s299 + $0x50] sm:$0xff]
        %v311 = vld [vmem:[%s299 + $0x58] sm:$0xff]
        %v312 = vld [vmem:[%s299 + $0x60] sm:$0xff]
        %v313 = vld [vmem:[%s299 + $0x68] sm:$0xff]
        %v314 = vld [vmem:[%s299 + $0x70] sm:$0xff]
        %v315 = vld [vmem:[%s299 + $0x78] sm:$0xff]
        %v316 = vld [vmem:[#allocation2] sm:$0xff]
        %v317 = vld [vmem:[#allocation2 + $0x8] sm:$0xff]
        %v318 = vld [vmem:[#allocation2 + $0x10] sm:$0xff]
        %v319 = vld [vmem:[#allocation2 + $0x18] sm:$0xff]
        %v320 = vld [vmem:[#allocation2 + $0x20] sm:$0xff]
        %v321 = vld [vmem:[#allocation2 + $0x28] sm:$0xff]
        %v322 = vld [vmem:[#allocation2 + $0x30] sm:$0xff]
        %v323 = vld [vmem:[#allocation2 + $0x38] sm:$0xff]
        %v324 = vld [vmem:[#allocation2 + $0x40] sm:$0xff]
        %v325 = vld [vmem:[#allocation2 + $0x48] sm:$0xff]
        %v326 = vld [vmem:[#allocation2 + $0x50] sm:$0xff]
        %v327 = vld [vmem:[#allocation2 + $0x58] sm:$0xff]
        %v328 = vld [vmem:[#allocation2 + $0x60] sm:$0xff]
        %v329 = vld [vmem:[#allocation2 + $0x68] sm:$0xff]
        %v330 = vld [vmem:[#allocation2 + $0x70] sm:$0xff]
        %v331 = vld [vmem:[#allocation2 + $0x78] sm:$0xff]
        %332 = vmatpush.msra.mxu0 %v296
        %333 = vmatpush.msra.mxu0 %v295
        %334 = vmatpush.msra.mxu0 %v294
        %335 = vmatpush.msra.mxu0 %v293
        %336 = vmatpush.msra.mxu0 %v292
        %337 = vmatpush.msra.mxu0 %v291
        %338 = vmatpush.msra.mxu0 %v290
        %339 = vmatpush.msra.mxu0 %v289
        %340 = vmatpush.msra.mxu0 %v288
        %341 = vmatpush.msra.mxu0 %v287
        %342 = vmatpush.msra.mxu0 %v286
        %343 = vmatpush.msra.mxu0 %v285
        %344 = vmatpush.msra.mxu0 %v284
        %345 = vmatpush.msra.mxu0 %v283
        %346 = vmatpush.msra.mxu0 %v282
        %347 = vmatpush.msra.mxu0 %v281
        %348 = vmatmul.f32.gmra.mxu0 %v300
        %v349 = vpop.f32.mrf.mxu0
        %v350 = vadd.f32 0.0, %v349
        %351 = vmatmul.f32.gmra.mxu0 %v301
        %v352 = vpop.f32.mrf.mxu0
        %v353 = vadd.f32 0.0, %v352
        %354 = vmatmul.f32.gmra.mxu0 %v302
        %v355 = vpop.f32.mrf.mxu0
        %v356 = vadd.f32 0.0, %v355
        %357 = vmatmul.f32.gmra.mxu0 %v303
        %v358 = vpop.f32.mrf.mxu0
        %v359 = vadd.f32 0.0, %v358
        %360 = vmatmul.f32.gmra.mxu0 %v304
        %v361 = vpop.f32.mrf.mxu0
        %v362 = vadd.f32 0.0, %v361
        %363 = vmatmul.f32.gmra.mxu0 %v305
        %v364 = vpop.f32.mrf.mxu0
        %v365 = vadd.f32 0.0, %v364
        %366 = vmatmul.f32.gmra.mxu0 %v306
        %v367 = vpop.f32.mrf.mxu0
        %v368 = vadd.f32 0.0, %v367
        %369 = vmatmul.f32.gmra.mxu0 %v307
        %v370 = vpop.f32.mrf.mxu0
        %v371 = vadd.f32 0.0, %v370
        %372 = vmatmul.f32.gmra.mxu0 %v308
        %v373 = vpop.f32.mrf.mxu0
        %v374 = vadd.f32 0.0, %v373
        %375 = vmatmul.f32.gmra.mxu0 %v309
        %v376 = vpop.f32.mrf.mxu0
        %v377 = vadd.f32 0.0, %v376
        %378 = vmatmul.f32.gmra.mxu0 %v310
        %v379 = vpop.f32.mrf.mxu0
        %v380 = vadd.f32 0.0, %v379
        %381 = vmatmul.f32.gmra.mxu0 %v311
        %v382 = vpop.f32.mrf.mxu0
        %v383 = vadd.f32 0.0, %v382
        %384 = vmatmul.f32.gmra.mxu0 %v312
        %v385 = vpop.f32.mrf.mxu0
        %v386 = vadd.f32 0.0, %v385
        %387 = vmatmul.f32.gmra.mxu0 %v313
        %v388 = vpop.f32.mrf.mxu0
        %v389 = vadd.f32 0.0, %v388
        %390 = vmatmul.f32.gmra.mxu0 %v314
        %v391 = vpop.f32.mrf.mxu0
        %v392 = vadd.f32 0.0, %v391
        %393 = vmatmul.f32.gmra.mxu0 %v315
        %v394 = vpop.f32.mrf.mxu0
        %v395 = vadd.f32 0.0, %v394
        %396 = vdwg.mxu0
        %v397 = vadd.f32 %v316, %v350
        %v398 = vadd.f32 %v317, %v353
        %v399 = vadd.f32 %v318, %v356
        %v400 = vadd.f32 %v319, %v359
        %v401 = vadd.f32 %v320, %v362
        %v402 = vadd.f32 %v321, %v365
        %v403 = vadd.f32 %v322, %v368
        %v404 = vadd.f32 %v323, %v371
        %v405 = vadd.f32 %v324, %v374
        %v406 = vadd.f32 %v325, %v377
        %v407 = vadd.f32 %v326, %v380
        %v408 = vadd.f32 %v327, %v383
        %v409 = vadd.f32 %v328, %v386
        %v410 = vadd.f32 %v329, %v389
        %v411 = vadd.f32 %v330, %v392
        %v412 = vadd.f32 %v331, %v395
        %413 = vst [vmem:[#allocation2] sm:$0xff] %v397
        %414 = vst [vmem:[#allocation2 + $0x8] sm:$0xff] %v398
        %415 = vst [vmem:[#allocation2 + $0x10] sm:$0xff] %v399
        %416 = vst [vmem:[#allocation2 + $0x18] sm:$0xff] %v400
        %417 = vst [vmem:[#allocation2 + $0x20] sm:$0xff] %v401
        %418 = vst [vmem:[#allocation2 + $0x28] sm:$0xff] %v402
        %419 = vst [vmem:[#allocation2 + $0x30] sm:$0xff] %v403
        %420 = vst [vmem:[#allocation2 + $0x38] sm:$0xff] %v404
        %421 = vst [vmem:[#allocation2 + $0x40] sm:$0xff] %v405
        %422 = vst [vmem:[#allocation2 + $0x48] sm:$0xff] %v406
        %423 = vst [vmem:[#allocation2 + $0x50] sm:$0xff] %v407
        %424 = vst [vmem:[#allocation2 + $0x58] sm:$0xff] %v408
        %425 = vst [vmem:[#allocation2 + $0x60] sm:$0xff] %v409
        %426 = vst [vmem:[#allocation2 + $0x68] sm:$0xff] %v410
        %427 = vst [vmem:[#allocation2 + $0x70] sm:$0xff] %v411
        %428 = vst [vmem:[#allocation2 + $0x78] sm:$0xff] %v412
        // Predicated region
        $region60: #{tpu_custom_call.1} parent=27 // pred_check
          %p429 = pneg %p157
        $region61: #{tpu_custom_call.1} parent=27 // pred_check_branch
          %431 = sbr.rel (%p429) target = $region63
        $region62: #{tpu_custom_call.1} parent=27 // pred_region
          %s432 = scalar_lea.vmem [#allocation6], %s297
          %v433 = vld [vmem:[%s432] sm:$0xff]
          %v434 = vld [vmem:[%s432 + $0x8] sm:$0xff]
          %v435 = vld [vmem:[%s432 + $0x10] sm:$0xff]
          %v436 = vld [vmem:[%s432 + $0x18] sm:$0xff]
          %v437 = vld [vmem:[%s432 + $0x20] sm:$0xff]
          %v438 = vld [vmem:[%s432 + $0x28] sm:$0xff]
          %v439 = vld [vmem:[%s432 + $0x30] sm:$0xff]
          %v440 = vld [vmem:[%s432 + $0x38] sm:$0xff]
          %v441 = vld [vmem:[%s432 + $0x40] sm:$0xff]
          %v442 = vld [vmem:[%s432 + $0x48] sm:$0xff]
          %v443 = vld [vmem:[%s432 + $0x50] sm:$0xff]
          %v444 = vld [vmem:[%s432 + $0x58] sm:$0xff]
          %v445 = vld [vmem:[%s432 + $0x60] sm:$0xff]
          %v446 = vld [vmem:[%s432 + $0x68] sm:$0xff]
          %v447 = vld [vmem:[%s432 + $0x70] sm:$0xff]
          %v448 = vld [vmem:[%s432 + $0x78] sm:$0xff]
          %s449 = scalar_lea.vmem %s2, %s297
          %v450 = vld [vmem:[%s449] sm:$0xff]
          %v451 = vld [vmem:[%s449 + $0x8] sm:$0xff]
          %v452 = vld [vmem:[%s449 + $0x10] sm:$0xff]
          %v453 = vld [vmem:[%s449 + $0x18] sm:$0xff]
          %v454 = vld [vmem:[%s449 + $0x20] sm:$0xff]
          %v455 = vld [vmem:[%s449 + $0x28] sm:$0xff]
          %v456 = vld [vmem:[%s449 + $0x30] sm:$0xff]
          %v457 = vld [vmem:[%s449 + $0x38] sm:$0xff]
          %v458 = vld [vmem:[%s449 + $0x40] sm:$0xff]
          %v459 = vld [vmem:[%s449 + $0x48] sm:$0xff]
          %v460 = vld [vmem:[%s449 + $0x50] sm:$0xff]
          %v461 = vld [vmem:[%s449 + $0x58] sm:$0xff]
          %v462 = vld [vmem:[%s449 + $0x60] sm:$0xff]
          %v463 = vld [vmem:[%s449 + $0x68] sm:$0xff]
          %v464 = vld [vmem:[%s449 + $0x70] sm:$0xff]
          %v465 = vld [vmem:[%s449 + $0x78] sm:$0xff]
          %vm466 = vcmp.gt.f32.partialorder %v450, 0.0
          %vm467 = vcmp.gt.f32.partialorder %v451, 0.0
          %vm468 = vcmp.gt.f32.partialorder %v452, 0.0
          %vm469 = vcmp.gt.f32.partialorder %v453, 0.0
          %vm470 = vcmp.gt.f32.partialorder %v454, 0.0
          %vm471 = vcmp.gt.f32.partialorder %v455, 0.0
          %vm472 = vcmp.gt.f32.partialorder %v456, 0.0
          %vm473 = vcmp.gt.f32.partialorder %v457, 0.0
          %vm474 = vcmp.gt.f32.partialorder %v458, 0.0
          %vm475 = vcmp.gt.f32.partialorder %v459, 0.0
          %vm476 = vcmp.gt.f32.partialorder %v460, 0.0
          %vm477 = vcmp.gt.f32.partialorder %v461, 0.0
          %vm478 = vcmp.gt.f32.partialorder %v462, 0.0
          %vm479 = vcmp.gt.f32.partialorder %v463, 0.0
          %vm480 = vcmp.gt.f32.partialorder %v464, 0.0
          %vm481 = vcmp.gt.f32.partialorder %v465, 0.0
          %v482 = vld [vmem:[#allocation2] sm:$0xff]
          %v483 = vld [vmem:[#allocation2 + $0x8] sm:$0xff]
          %v484 = vld [vmem:[#allocation2 + $0x10] sm:$0xff]
          %v485 = vld [vmem:[#allocation2 + $0x18] sm:$0xff]
          %v486 = vld [vmem:[#allocation2 + $0x20] sm:$0xff]
          %v487 = vld [vmem:[#allocation2 + $0x28] sm:$0xff]
          %v488 = vld [vmem:[#allocation2 + $0x30] sm:$0xff]
          %v489 = vld [vmem:[#allocation2 + $0x38] sm:$0xff]
          %v490 = vld [vmem:[#allocation2 + $0x40] sm:$0xff]
          %v491 = vld [vmem:[#allocation2 + $0x48] sm:$0xff]
          %v492 = vld [vmem:[#allocation2 + $0x50] sm:$0xff]
          %v493 = vld [vmem:[#allocation2 + $0x58] sm:$0xff]
          %v494 = vld [vmem:[#allocation2 + $0x60] sm:$0xff]
          %v495 = vld [vmem:[#allocation2 + $0x68] sm:$0xff]
          %v496 = vld [vmem:[#allocation2 + $0x70] sm:$0xff]
          %v497 = vld [vmem:[#allocation2 + $0x78] sm:$0xff]
          %v498 = vsel %vm466, 1, 0
          %v499 = vsel %vm467, 1, 0
          %v500 = vsel %vm468, 1, 0
          %v501 = vsel %vm469, 1, 0
          %v502 = vsel %vm470, 1, 0
          %v503 = vsel %vm471, 1, 0
          %v504 = vsel %vm472, 1, 0
          %v505 = vsel %vm473, 1, 0
          %v506 = vsel %vm474, 1, 0
          %v507 = vsel %vm475, 1, 0
          %v508 = vsel %vm476, 1, 0
          %v509 = vsel %vm477, 1, 0
          %v510 = vsel %vm478, 1, 0
          %v511 = vsel %vm479, 1, 0
          %v512 = vsel %vm480, 1, 0
          %v513 = vsel %vm481, 1, 0
          %514 = vset.pattern.permute.xlu0 0
          %515 = vperm.xlu0 %514, %v498
          %v516 = vpop.permute.xlu0 %515
          %517 = vset.pattern.permute.xlu0 0
          %518 = vperm.xlu0 %517, %v499
          %v519 = vpop.permute.xlu0 %518
          %520 = vset.pattern.permute.xlu0 0
          %521 = vperm.xlu0 %520, %v500
          %v522 = vpop.permute.xlu0 %521
          %523 = vset.pattern.permute.xlu0 0
          %524 = vperm.xlu0 %523, %v501
          %v525 = vpop.permute.xlu0 %524
          %526 = vset.pattern.permute.xlu0 0
          %527 = vperm.xlu0 %526, %v502
          %v528 = vpop.permute.xlu0 %527
          %529 = vset.pattern.permute.xlu0 0
          %530 = vperm.xlu0 %529, %v503
          %v531 = vpop.permute.xlu0 %530
          %532 = vset.pattern.permute.xlu0 0
          %533 = vperm.xlu0 %532, %v504
          %v534 = vpop.permute.xlu0 %533
          %535 = vset.pattern.permute.xlu0 0
          %536 = vperm.xlu0 %535, %v505
          %v537 = vpop.permute.xlu0 %536
          %538 = vset.pattern.permute.xlu0 0
          %539 = vperm.xlu0 %538, %v506
          %v540 = vpop.permute.xlu0 %539
          %541 = vset.pattern.permute.xlu0 0
          %542 = vperm.xlu0 %541, %v507
          %v543 = vpop.permute.xlu0 %542
          %544 = vset.pattern.permute.xlu0 0
          %545 = vperm.xlu0 %544, %v508
          %v546 = vpop.permute.xlu0 %545
          %547 = vset.pattern.permute.xlu0 0
          %548 = vperm.xlu0 %547, %v509
          %v549 = vpop.permute.xlu0 %548
          %550 = vset.pattern.permute.xlu0 0
          %551 = vperm.xlu0 %550, %v510
          %v552 = vpop.permute.xlu0 %551
          %553 = vset.pattern.permute.xlu0 0
          %554 = vperm.xlu0 %553, %v511
          %v555 = vpop.permute.xlu0 %554
          %556 = vset.pattern.permute.xlu0 0
          %557 = vperm.xlu0 %556, %v512
          %v558 = vpop.permute.xlu0 %557
          %559 = vset.pattern.permute.xlu0 0
          %560 = vperm.xlu0 %559, %v513
          %v561 = vpop.permute.xlu0 %560
          %vm562 = vcmp.eq.s32.totalorder %v516, 1
          %vm563 = vcmp.eq.s32.totalorder %v519, 1
          %vm564 = vcmp.eq.s32.totalorder %v522, 1
          %vm565 = vcmp.eq.s32.totalorder %v525, 1
          %vm566 = vcmp.eq.s32.totalorder %v528, 1
          %vm567 = vcmp.eq.s32.totalorder %v531, 1
          %vm568 = vcmp.eq.s32.totalorder %v534, 1
          %vm569 = vcmp.eq.s32.totalorder %v537, 1
          %vm570 = vcmp.eq.s32.totalorder %v540, 1
          %vm571 = vcmp.eq.s32.totalorder %v543, 1
          %vm572 = vcmp.eq.s32.totalorder %v546, 1
          %vm573 = vcmp.eq.s32.totalorder %v549, 1
          %vm574 = vcmp.eq.s32.totalorder %v552, 1
          %vm575 = vcmp.eq.s32.totalorder %v555, 1
          %vm576 = vcmp.eq.s32.totalorder %v558, 1
          %vm577 = vcmp.eq.s32.totalorder %v561, 1
          %v578 = vsel %vm562, %v433, %v482
          %v579 = vsel %vm563, %v434, %v483
          %v580 = vsel %vm564, %v435, %v484
          %v581 = vsel %vm565, %v436, %v485
          %v582 = vsel %vm566, %v437, %v486
          %v583 = vsel %vm567, %v438, %v487
          %v584 = vsel %vm568, %v439, %v488
          %v585 = vsel %vm569, %v440, %v489
          %v586 = vsel %vm570, %v441, %v490
          %v587 = vsel %vm571, %v442, %v491
          %v588 = vsel %vm572, %v443, %v492
          %v589 = vsel %vm573, %v444, %v493
          %v590 = vsel %vm574, %v445, %v494
          %v591 = vsel %vm575, %v446, %v495
          %v592 = vsel %vm576, %v447, %v496
          %v593 = vsel %vm577, %v448, %v497
          %v594 = vmax.f32 %v578, 0.0
          %v595 = vmax.f32 %v579, 0.0
          %v596 = vmax.f32 %v580, 0.0
          %v597 = vmax.f32 %v581, 0.0
          %v598 = vmax.f32 %v582, 0.0
          %v599 = vmax.f32 %v583, 0.0
          %v600 = vmax.f32 %v584, 0.0
          %v601 = vmax.f32 %v585, 0.0
          %v602 = vmax.f32 %v586, 0.0
          %v603 = vmax.f32 %v587, 0.0
          %v604 = vmax.f32 %v588, 0.0
          %v605 = vmax.f32 %v589, 0.0
          %v606 = vmax.f32 %v590, 0.0
          %v607 = vmax.f32 %v591, 0.0
          %v608 = vmax.f32 %v592, 0.0
          %v609 = vmax.f32 %v593, 0.0
          %v610 = vmin.f32 %v594, 1.0
          %v611 = vmin.f32 %v595, 1.0
          %v612 = vmin.f32 %v596, 1.0
          %v613 = vmin.f32 %v597, 1.0
          %v614 = vmin.f32 %v598, 1.0
          %v615 = vmin.f32 %v599, 1.0
          %v616 = vmin.f32 %v600, 1.0
          %v617 = vmin.f32 %v601, 1.0
          %v618 = vmin.f32 %v602, 1.0
          %v619 = vmin.f32 %v603, 1.0
          %v620 = vmin.f32 %v604, 1.0
          %v621 = vmin.f32 %v605, 1.0
          %v622 = vmin.f32 %v606, 1.0
          %v623 = vmin.f32 %v607, 1.0
          %v624 = vmin.f32 %v608, 1.0
          %v625 = vmin.f32 %v609, 1.0
          %s626 = ssub.s32 1, %s276
          %s627 = smul.u32 %s626, 128
          %s628 = sadd.s32 %s627, %s297
          %s629 = scalar_lea.vmem [#allocation3], %s628
          %630 = vst [vmem:[%s629] sm:$0xff] %v610
          %631 = vst [vmem:[%s629 + $0x8] sm:$0xff] %v611
          %632 = vst [vmem:[%s629 + $0x10] sm:$0xff] %v612
          %633 = vst [vmem:[%s629 + $0x18] sm:$0xff] %v613
          %634 = vst [vmem:[%s629 + $0x20] sm:$0xff] %v614
          %635 = vst [vmem:[%s629 + $0x28] sm:$0xff] %v615
          %636 = vst [vmem:[%s629 + $0x30] sm:$0xff] %v616
          %637 = vst [vmem:[%s629 + $0x38] sm:$0xff] %v617
          %638 = vst [vmem:[%s629 + $0x40] sm:$0xff] %v618
          %639 = vst [vmem:[%s629 + $0x48] sm:$0xff] %v619
          %640 = vst [vmem:[%s629 + $0x50] sm:$0xff] %v620
          %641 = vst [vmem:[%s629 + $0x58] sm:$0xff] %v621
          %642 = vst [vmem:[%s629 + $0x60] sm:$0xff] %v622
          %643 = vst [vmem:[%s629 + $0x68] sm:$0xff] %v623
          %644 = vst [vmem:[%s629 + $0x70] sm:$0xff] %v624
          %645 = vst [vmem:[%s629 + $0x78] sm:$0xff] %v625
          %646 = vst [vmem:[#allocation9] sm:$0xff] %v610
          %647 = vst [vmem:[#allocation9 + $0x8] sm:$0xff] %v611
          %648 = vst [vmem:[#allocation9 + $0x10] sm:$0xff] %v612
          %649 = vst [vmem:[#allocation9 + $0x18] sm:$0xff] %v613
          %650 = vst [vmem:[#allocation9 + $0x20] sm:$0xff] %v614
          %651 = vst [vmem:[#allocation9 + $0x28] sm:$0xff] %v615
          %652 = vst [vmem:[#allocation9 + $0x30] sm:$0xff] %v616
          %653 = vst [vmem:[#allocation9 + $0x38] sm:$0xff] %v617
          %654 = vst [vmem:[#allocation9 + $0x40] sm:$0xff] %v618
          %655 = vst [vmem:[#allocation9 + $0x48] sm:$0xff] %v619
          %656 = vst [vmem:[#allocation9 + $0x50] sm:$0xff] %v620
          %657 = vst [vmem:[#allocation9 + $0x58] sm:$0xff] %v621
          %658 = vst [vmem:[#allocation9 + $0x60] sm:$0xff] %v622
          %659 = vst [vmem:[#allocation9 + $0x68] sm:$0xff] %v623
          %660 = vst [vmem:[#allocation9 + $0x70] sm:$0xff] %v624
          %661 = vst [vmem:[#allocation9 + $0x78] sm:$0xff] %v625
        $region63: #{tpu_custom_call.1} parent=27 // pred_fallthru
          _
        // Predicated region
        $region64: #{tpu_custom_call.1} parent=27 // pred_check
          %p662 = pneg %p95
        $region65: #{tpu_custom_call.1} parent=27 // pred_check_branch
          %664 = sbr.rel (%p662) target = $region67
        $region66: #{tpu_custom_call.1} parent=27 // pred_region
          %s665 = smul.u32 16, %s22
          %667 = vsyncadd [#allocation8], 0
          %s668 = smul.addr %s665, 8
          %s669 = scalar_lea.hbm %s3, %s668
          %s670 = sshll.u32 [#allocation9], 4
          %s671 = int_to_ptr.vmem [resolvable:$true] %s670
          %s672 = sshll.u32 %s669, 4
          %s673 = int_to_ptr.hbm [resolvable:$true] %s672
          %678 = dma.vmem_to_hbm [thread:$0]  %s671, 2048, %s673, [#allocation8], 128, 128, 8
        $region67: #{tpu_custom_call.1} parent=27 // pred_fallthru
          _
        // Predicated region
        $region68: #{tpu_custom_call.1} parent=27 // pred_check
          %p679 = pneg %p95
        $region69: #{tpu_custom_call.1} parent=27 // pred_check_branch
          %681 = sbr.rel (%p679) target = $region71
        $region70: #{tpu_custom_call.1} parent=27 // pred_region
          %683 = dma.done [#allocation8], 2048
        $region71: #{tpu_custom_call.1} parent=27 // pred_fallthru
          _
      $region28: #{tpu_custom_call.1} parent=5 // pred_fallthru
        _
      %p684 = scmp.le.s32.totalorder 2, %s11
      // Predicated region
      $region72: #{tpu_custom_call.1} parent=5 // pred_check
        %p685 = pneg %p684
      $region73: #{tpu_custom_call.1} parent=5 // pred_check_branch
        %687 = sbr.rel (%p685) target = $region75
      $region74: #{tpu_custom_call.1} parent=5 // pred_region
        %s688 = ssub.s32 %s11, 2
      $region75: #{tpu_custom_call.1} parent=5 // pred_fallthru
        _
    $region6: #{tpu_custom_call.1} parent=1 // loop_footer
      %s15 = sadd.s32 1, %s11
    $region7: #{tpu_custom_call.1} parent=1 // loop_footer_branch
      %10 = sbr.rel target = $region3
    $region8: #{tpu_custom_call.1} parent=1 // loop_exit
      _
    %689 = vsyncpa [#allocation7], 1
    %s690 = scalar_lea.sflag [#allocation7], 1
    %691 = vsyncpa %s690, 1
    %692 = vsyncpa [#allocation8], 1
    %s693 = scalar_lea.sflag [#allocation8], 1
    %694 = vsyncpa %s693, 1
  %695 = vsyncmov [#allocation5]
  %s696 = vpop.sfrf %695
  %p697 = scmp.eq.s32.totalorder %s696, 0
  %p698 = pneg %p697
  %700 = shalt.err (%p698)

</llo_original>
